<compile_context>
chip_gen: v6e
topology: v6e:2x2x1
jax: 0.10.0
libtpu: 0.0.40
codegen_flags: <defaults>
</compile_context>

<pallas_src>
import functools

import jax
import jax.numpy as jnp
from jax.experimental import pallas as pl
from jax.experimental.pallas import tpu as pltpu

LANE = 128


# ---------------------------------------------------------------------------
# Fused DEM kernel: abs features + 1x1 conv (5 grouped dots) + bias
# ---------------------------------------------------------------------------

def _dem_kernel(x1_ref, x2_ref, w_ref, b_ref, o_ref, *, bblk):
    # x1_ref / x2_ref : (Bblk, C, T)   -- C on sublanes, T spatial on lanes
    # w_ref           : (5, Cout, C)   -- weight split by concat group
    # b_ref           : (Cout, 1)
    # o_ref           : (Bblk, Cout, T)
    w1 = w_ref[0]
    w2 = w_ref[1]
    w3 = w_ref[2]
    w4 = w_ref[3]
    w5 = w_ref[4]
    bias = b_ref[...].astype(jnp.float32)                    # (Cout, 1)

    for bi in range(bblk):                                    # short static unroll
        x1 = x1_ref[bi]                                       # (C, T), input dtype
        x2 = x2_ref[bi]
        xa = jnp.abs(x1 - x2)                                 # |x1 - x2|
        xa1 = jnp.abs(xa - x1)                                # ||x1-x2| - x1|
        xa2 = jnp.abs(xa - x2)                                # ||x1-x2| - x2|

        acc = jnp.dot(w1, x1, preferred_element_type=jnp.float32)
        acc = acc + jnp.dot(w2, x2, preferred_element_type=jnp.float32)
        acc = acc + jnp.dot(w3, xa, preferred_element_type=jnp.float32)
        acc = acc + jnp.dot(w4, xa1, preferred_element_type=jnp.float32)
        acc = acc + jnp.dot(w5, xa2, preferred_element_type=jnp.float32)
        acc = acc + bias                                      # (Cout, T)
        o_ref[bi] = acc.astype(o_ref.dtype)


# ---------------------------------------------------------------------------
# Tiling selection (explicit VMEM budget, v7x-safe)
# ---------------------------------------------------------------------------

def _choose_tiling(B, HWp, C, Cout, itemsize):
    """Returns (Bblk, T, n_t).

    T       : spatial tile (multiple of 128 dividing the padded H*W)
    n_t     : number of spatial tiles
    Bblk    : batches processed per grid step (divisor of B, small static unroll)
    """
    budget = 12 * 1024 * 1024                     # double-buffered block budget
    per_lane = 2 * (2 * C + Cout) * itemsize      # 2 inputs + 1 output, x2 buffers
    cap = max(LANE, min(16384, budget // max(per_lane, 1)))

    def largest_tile(min_steps):
        best = None
        t = LANE
        hi = min(cap, HWp)
        while t <= hi:
            if HWp % t == 0 and HWp // t >= min_steps:
                best = t
            t += LANE
        return best

    # Prefer >= 2 spatial steps when B == 1 so both v7x TensorCores get work.
    T = largest_tile(2 if B == 1 else 1)
    if T is None:
        T = largest_tile(1)
    if T is None:
        T = HWp
    n_t = HWp // T

    # If one tile covers all of H*W, block several batches per step to
    # amortize per-step overhead (but keep >= 2 total grid steps).
    Bblk = 1
    if n_t == 1 and B > 1:
        per_batch = per_lane * T
        max_bblk = min(16, max(1, budget // max(per_batch, 1)))
        for d in range(1, B + 1):
            if B % d == 0 and d <= max_bblk and B // d >= 2:
                Bblk = d
    return Bblk, T, n_t


# ---------------------------------------------------------------------------
# Wrapper
# ---------------------------------------------------------------------------

def dem_forward(x1, x2, w, b):
    """x1, x2: (B, C, H, W); w: (Cout, 5C); b: (Cout,) -> (B, Cout, H, W)."""
    B, C, H, W = x1.shape
    Cout, Cin5 = w.shape
    assert Cin5 == 5 * C, "conv1 expects 5*in_channels input channels"
    HW = H * W
    HWp = ((HW + LANE - 1) // LANE) * LANE        # lane-dense padded spatial extent

    x1f = x1.reshape(B, C, HW)
    x2f = x2.reshape(B, C, HW)
    if HWp != HW:
        pad = HWp - HW
        x1f = jnp.pad(x1f, ((0, 0), (0, 0), (0, pad)))
        x2f = jnp.pad(x2f, ((0, 0), (0, 0), (0, pad)))

    # Split the (Cout, 5C) 1x1-conv weight into its five concat groups.
    wg = w.reshape(Cout, 5, C).transpose(1, 0, 2)             # (5, Cout, C)
    b2 = b.reshape(Cout, 1)

    itemsize = jnp.dtype(x1.dtype).itemsize
    Bblk, T, n_t = _choose_tiling(B, HWp, C, Cout, itemsize)

    out = pl.pallas_call(
        functools.partial(_dem_kernel, bblk=Bblk),
        out_shape=jax.ShapeDtypeStruct((B, Cout, HWp), x1.dtype),
        grid=(B // Bblk, n_t),
        in_specs=[
            pl.BlockSpec((Bblk, C, T), lambda bi, ti: (bi, 0, ti)),
            pl.BlockSpec((Bblk, C, T), lambda bi, ti: (bi, 0, ti)),
            pl.BlockSpec((5, Cout, C), lambda bi, ti: (0, 0, 0)),
            pl.BlockSpec((Cout, 1), lambda bi, ti: (0, 0)),
        ],
        out_specs=pl.BlockSpec((Bblk, Cout, T), lambda bi, ti: (bi, 0, ti)),
        compiler_params=pltpu.CompilerParams(
            dimension_semantics=("parallel", "parallel"),
            vmem_limit_bytes=32 * 1024 * 1024),
    )(x1f, x2f, wg, b2)

    return out[..., :HW].reshape(B, Cout, H, W)


# ---------------------------------------------------------------------------
# Plain-JAX reference (for correctness check)
# ---------------------------------------------------------------------------

def dem_ref(x1, x2, w, b):
    xa = jnp.abs(x1 - x2)
    xa1 = jnp.abs(xa - x1)
    xa2 = jnp.abs(xa - x2)
    X = jnp.concatenate([x1, x2, xa, xa1, xa2], axis=1)       # (B, 5C, H, W)
    out = jnp.einsum('bchw,oc->bohw', X, w) + b[None, :, None, None]
    return out


# ---------------------------------------------------------------------------
# Demo / self-check
# ---------------------------------------------------------------------------

if __name__ == "__main__":
    key = jax.random.PRNGKey(0)

    def run_case(B, C, H, W, Cout, key):
        k1, k2, k3, k4 = jax.random.split(key, 4)
        x1 = jax.random.normal(k1, (B, C, H, W), jnp.float32)
        x2 = jax.random.normal(k2, (B, C, H, W), jnp.float32)
        w = jax.random.normal(k3, (Cout, 5 * C), jnp.float32) * 0.1
        b = jax.random.normal(k4, (Cout,), jnp.float32) * 0.1
        y = dem_forward(x1, x2, w, b)
        jax.block_until_ready(y)
        y_ref = dem_ref(x1, x2, w, b)
        assert y.shape == (B, Cout, H, W)
        assert bool(jnp.isfinite(y).all())
        assert bool(jnp.allclose(y, y_ref, atol=1e-5, rtol=1e-5)), \
            f"mismatch vs reference for case {(B, C, H, W, Cout)}"

    keys = jax.random.split(key, 3)
    run_case(2, 4, 16, 16, 8, keys[0])     # main case: lane-aligned spatial
    run_case(2, 4, 10, 10, 8, keys[1])     # exercises H*W -> multiple-of-128 padding
    run_case(8, 4, 8, 8, 8, keys[2])       # exercises batch-blocking (Bblk > 1)

    print("KERNEL_OK")
</pallas_src>

<mosaic_0001>
module attributes {stable_mosaic.version = 11 : i64} {
  func.func @_dem_kernel(%arg0: i32, %arg1: i32, %arg2: memref<1x4x256xf32, #tpu.memory_space<vmem>>, %arg3: memref<1x4x256xf32, #tpu.memory_space<vmem>>, %arg4: memref<5x8x4xf32, #tpu.memory_space<vmem>>, %arg5: memref<8x1xf32, #tpu.memory_space<vmem>>, %arg6: memref<1x8x256xf32, #tpu.memory_space<vmem>>) attributes {dimension_semantics = [#tpu.dimension_semantics<parallel>, #tpu.dimension_semantics<parallel>], iteration_bounds = array<i64: 2, 1>, scalar_prefetch = 0 : i64, scratch_operands = 0 : i64, tpu.core_type = #tpu.core_type<tc>, window_params = [{transform_indices = @transform_0, window_bounds = array<i64: 1, 4, 256>}, {transform_indices = @transform_1, window_bounds = array<i64: 1, 4, 256>}, {pipeline_mode = #tpu.pipeline_mode<synchronous>, transform_indices = @transform_2, window_bounds = array<i64: 5, 8, 4>}, {pipeline_mode = #tpu.pipeline_mode<synchronous>, transform_indices = @transform_3, window_bounds = array<i64: 8, 1>}, {transform_indices = @transform_4, window_bounds = array<i64: 1, 8, 256>}]} {
    %c0 = arith.constant 0 : index
    %c0_0 = arith.constant 0 : index
    %c0_1 = arith.constant 0 : index
    %0 = vector.load %arg4[%c0, %c0_0, %c0_1] : memref<5x8x4xf32, #tpu.memory_space<vmem>>, vector<1x8x4xf32>
    %1 = vector.shape_cast %0 : vector<1x8x4xf32> to vector<8x4xf32>
    %c1 = arith.constant 1 : index
    %c0_2 = arith.constant 0 : index
    %c0_3 = arith.constant 0 : index
    %2 = vector.load %arg4[%c1, %c0_2, %c0_3] : memref<5x8x4xf32, #tpu.memory_space<vmem>>, vector<1x8x4xf32>
    %3 = vector.shape_cast %2 : vector<1x8x4xf32> to vector<8x4xf32>
    %c2 = arith.constant 2 : index
    %c0_4 = arith.constant 0 : index
    %c0_5 = arith.constant 0 : index
    %4 = vector.load %arg4[%c2, %c0_4, %c0_5] : memref<5x8x4xf32, #tpu.memory_space<vmem>>, vector<1x8x4xf32>
    %5 = vector.shape_cast %4 : vector<1x8x4xf32> to vector<8x4xf32>
    %c3 = arith.constant 3 : index
    %c0_6 = arith.constant 0 : index
    %c0_7 = arith.constant 0 : index
    %6 = vector.load %arg4[%c3, %c0_6, %c0_7] : memref<5x8x4xf32, #tpu.memory_space<vmem>>, vector<1x8x4xf32>
    %7 = vector.shape_cast %6 : vector<1x8x4xf32> to vector<8x4xf32>
    %c4 = arith.constant 4 : index
    %c0_8 = arith.constant 0 : index
    %c0_9 = arith.constant 0 : index
    %8 = vector.load %arg4[%c4, %c0_8, %c0_9] : memref<5x8x4xf32, #tpu.memory_space<vmem>>, vector<1x8x4xf32>
    %9 = vector.shape_cast %8 : vector<1x8x4xf32> to vector<8x4xf32>
    %c0_10 = arith.constant 0 : index
    %c0_11 = arith.constant 0 : index
    %10 = vector.load %arg5[%c0_10, %c0_11] : memref<8x1xf32, #tpu.memory_space<vmem>>, vector<8x1xf32>
    %c0_12 = arith.constant 0 : index
    %c0_13 = arith.constant 0 : index
    %c0_14 = arith.constant 0 : index
    %11 = vector.load %arg2[%c0_12, %c0_13, %c0_14] : memref<1x4x256xf32, #tpu.memory_space<vmem>>, vector<1x4x256xf32>
    %12 = vector.shape_cast %11 : vector<1x4x256xf32> to vector<4x256xf32>
    %c0_15 = arith.constant 0 : index
    %c0_16 = arith.constant 0 : index
    %c0_17 = arith.constant 0 : index
    %13 = vector.load %arg3[%c0_15, %c0_16, %c0_17] : memref<1x4x256xf32, #tpu.memory_space<vmem>>, vector<1x4x256xf32>
    %14 = vector.shape_cast %13 : vector<1x4x256xf32> to vector<4x256xf32>
    %15 = arith.subf %12, %14 : vector<4x256xf32>
    %16 = math.absf %15 : vector<4x256xf32>
    %17 = arith.subf %16, %12 : vector<4x256xf32>
    %18 = math.absf %17 : vector<4x256xf32>
    %19 = arith.subf %16, %14 : vector<4x256xf32>
    %20 = math.absf %19 : vector<4x256xf32>
    %cst = arith.constant dense<0.000000e+00> : vector<8x256xf32>
    %21 = tpu.matmul %1, %12, %cst {dimension_numbers = #tpu.dot_dimension_numbers<[1], [0], [0], [1], [0, 0, 1, 1], [], []>} : vector<8x4xf32>, vector<4x256xf32>, vector<8x256xf32> -> vector<8x256xf32>
    %cst_18 = arith.constant dense<0.000000e+00> : vector<8x256xf32>
    %22 = tpu.matmul %3, %14, %cst_18 {dimension_numbers = #tpu.dot_dimension_numbers<[1], [0], [0], [1], [0, 0, 1, 1], [], []>} : vector<8x4xf32>, vector<4x256xf32>, vector<8x256xf32> -> vector<8x256xf32>
    %23 = arith.addf %21, %22 : vector<8x256xf32>
    %cst_19 = arith.constant dense<0.000000e+00> : vector<8x256xf32>
    %24 = tpu.matmul %5, %16, %cst_19 {dimension_numbers = #tpu.dot_dimension_numbers<[1], [0], [0], [1], [0, 0, 1, 1], [], []>} : vector<8x4xf32>, vector<4x256xf32>, vector<8x256xf32> -> vector<8x256xf32>
    %25 = arith.addf %23, %24 : vector<8x256xf32>
    %cst_20 = arith.constant dense<0.000000e+00> : vector<8x256xf32>
    %26 = tpu.matmul %7, %18, %cst_20 {dimension_numbers = #tpu.dot_dimension_numbers<[1], [0], [0], [1], [0, 0, 1, 1], [], []>} : vector<8x4xf32>, vector<4x256xf32>, vector<8x256xf32> -> vector<8x256xf32>
    %27 = arith.addf %25, %26 : vector<8x256xf32>
    %cst_21 = arith.constant dense<0.000000e+00> : vector<8x256xf32>
    %28 = tpu.matmul %9, %20, %cst_21 {dimension_numbers = #tpu.dot_dimension_numbers<[1], [0], [0], [1], [0, 0, 1, 1], [], []>} : vector<8x4xf32>, vector<4x256xf32>, vector<8x256xf32> -> vector<8x256xf32>
    %29 = arith.addf %27, %28 : vector<8x256xf32>
    %30 = vector.broadcast %10 : vector<8x1xf32> to vector<8x256xf32>
    %31 = arith.addf %29, %30 : vector<8x256xf32>
    %c0_22 = arith.constant 0 : index
    %c0_23 = arith.constant 0 : index
    %c0_24 = arith.constant 0 : index
    %32 = vector.load %arg6[%c0_22, %c0_23, %c0_24] : memref<1x8x256xf32, #tpu.memory_space<vmem>>, vector<1x8x256xf32>
    %33 = vector.shape_cast %32 : vector<1x8x256xf32> to vector<8x256xf32>
    %34 = vector.shape_cast %31 : vector<8x256xf32> to vector<1x8x256xf32>
    tpu.vector_store %arg6[%c0_22, %c0_23, %c0_24], %34 {strides = array<i32>} : memref<1x8x256xf32, #tpu.memory_space<vmem>>, vector<1x8x256xf32>,
    return
  }
  func.func @transform_0(%arg0: i32, %arg1: i32) -> (i32, i32, i32) {
    %c0_i32 = arith.constant 0 : i32
    %c0_i32_0 = arith.constant 0 : i32
    return %arg0, %c0_i32, %arg1 : i32, i32, i32
  }
  func.func @transform_1(%arg0: i32, %arg1: i32) -> (i32, i32, i32) {
    %c0_i32 = arith.constant 0 : i32
    %c0_i32_0 = arith.constant 0 : i32
    return %arg0, %c0_i32, %arg1 : i32, i32, i32
  }
  func.func @transform_2(%arg0: i32, %arg1: i32) -> (i32, i32, i32) {
    %c0_i32 = arith.constant 0 : i32
    %c0_i32_0 = arith.constant 0 : i32
    %c0_i32_1 = arith.constant 0 : i32
    %c0_i32_2 = arith.constant 0 : i32
    return %c0_i32, %c0_i32_0, %c0_i32_1 : i32, i32, i32
  }
  func.func @transform_3(%arg0: i32, %arg1: i32) -> (i32, i32) {
    %c0_i32 = arith.constant 0 : i32
    %c0_i32_0 = arith.constant 0 : i32
    %c0_i32_1 = arith.constant 0 : i32
    return %c0_i32, %c0_i32_0 : i32, i32
  }
  func.func @transform_4(%arg0: i32, %arg1: i32) -> (i32, i32, i32) {
    %c0_i32 = arith.constant 0 : i32
    %c0_i32_0 = arith.constant 0 : i32
    return %arg0, %c0_i32, %arg1 : i32, i32, i32
  }
}

</mosaic_0001>

<llo_original>
// kernel: tpu_custom_call.1
$region0: #{tpu_custom_call.1}
  #allocation0 [shape = 'u32[]', space=smem, size = 0x4, offset = 0x4, fixed_abs, tag = 'smem constant byte address 0x4 - core index']
  #allocation1 [shape = 'u32[144,128]{1,0:T(1,128)}', space=vmem, size = 0x12000, scoped, tag = 'internal scratch']
  %s0 = inlined_call_operand.vmem [shape: f32[2,4,256], index: 0, kind: input, shape index: {}]
  %s1 = inlined_call_operand.vmem [shape: f32[2,4,256], index: 1, kind: input, shape index: {}]
  %s2 = inlined_call_operand.vmem [shape: f32[5,8,4], index: 2, kind: input, shape index: {}]
  %s3 = inlined_call_operand.vmem [shape: f32[8,1], index: 3, kind: input, shape index: {}]
  %s4 = inlined_call_operand.hbm [shape: f32[2,8,256], index: 4, kind: output, shape index: {}]
  %s5 = sld [smem:[#allocation0]]
  $region49: #{tpu_custom_call.1} parent=0
    _
  %s7 = ssub.s32 1, %s5
  %s8 = scalar_select 0, %s7, %s5
  $region1: #{tpu_custom_call.1} parent=0
    #allocation2 [shape = 'u8[16384]{0}', space=vmem, size = 0x4000, scoped, tag = 'output window, operand 0']
    #allocation3 [shape = 's32[2]{0}', space=sflag, size = 0x8, scoped, tag = 'scoped memory for tpu_custom_call.1']
    %9 = vsyncpa [#allocation3], 0
    %s10 = scalar_lea.sflag [#allocation3], 1
    %11 = vsyncpa %s10, 0
    loop: start=0, step=1, limit=4
    $region2: #{tpu_custom_call.1} parent=1 // loop_pre_header
      _
    $region3: #{tpu_custom_call.1} parent=1 // loop_header
      %s13 = sphi 0, %s17
      %p14 = scmp.ge.s32.totalorder %s13, 4
      %s20 = sphi 0, %s32
      %s21 = sphi 0, %s28
      %s22 = sphi 0, %s20
      %s23 = sphi 0, %s21
      %s24 = sphi 0, %s22
      %s25 = sphi 0, %s23
      %s37 = sphi 0, %s39
      %s40 = sphi 0, %s37
      %s41 = sphi 0, %s40
      %s57 = sphi 0, %s41
      %s65 = sphi 0, %s67
      %s68 = sphi 0, %s65
      %s69 = sphi 0, %s68
      %s85 = sphi 0, %s69
      %s89 = sphi 0, %s89
      %s91 = sphi 0, %s89
      %s92 = sphi 0, %s91
      %s106 = sphi 0, %s92
      %s110 = sphi 0, %s110
      %s112 = sphi 0, %s110
      %s113 = sphi 0, %s112
      %s127 = sphi 0, %s113
      %s135 = sphi 0, %s137
      %s138 = sphi 0, %s135
      %s139 = sphi 0, %s138
      %s155 = sphi 0, %s139
    $region4: #{tpu_custom_call.1} parent=1 // loop_header_branch
      %16 = sbr.rel (%p14) target = $region8
    $region5: #{tpu_custom_call.1} parent=1 // loop_body
      %s18 = ssub.s32 %s13, 1
      %s19 = ssub.s32 %s13, 2
      %s26 = sadd.s32 1, %s21
      %p27 = scmp.ge.s32.totalorder %s26, 1
      %s28 = scalar_select %p27, 0, %s26
      %s29 = sadd.s32 1, %s20
      %s30 = scalar_select %p27, %s29, %s20
      %p31 = scmp.ge.s32.totalorder %s30, 2
      %s32 = scalar_select %p31, 0, %s30
      %s33 = ssub.s32 %s20, %s32
      %s34 = ssub.s32 %s21, %s28
      %s35 = sor.u32 %s33, %s34
      %p36 = scmp.eq.s32.totalorder %s35, 0
      %s38 = sadd.s32 %s37, 1
      %s39 = scalar_select %p36, %s37, %s38
      %p42 = pneg %p36
      %p43 = scmp.eq.s32.totalorder %s13, 1
      %p44 = por %p42, %p43
      %p45 = scmp.ne.s32.totalorder %s37, %s40
      %p46 = scmp.eq.s32.totalorder %s13, 0
      %p47 = por %p45, %p46
      %p48 = scmp.ne.s32.totalorder %s37, %s40
      %p49 = scmp.eq.s32.totalorder %s18, 1
      %p50 = por %p48, %p49
      %p51 = scmp.ne.s32.totalorder %s40, %s41
      %p52 = scmp.eq.s32.totalorder %s18, 0
      %p53 = por %p51, %p52
      %p54 = scmp.ne.s32.totalorder %s40, %s41
      %p55 = scmp.eq.s32.totalorder %s19, 1
      %p56 = por %p54, %p55
      %p58 = scmp.ne.s32.totalorder %s41, %s57
      %p59 = scmp.eq.s32.totalorder %s19, 0
      %p60 = por %p58, %p59
      %s61 = ssub.s32 %s20, %s32
      %s62 = ssub.s32 %s21, %s28
      %s63 = sor.u32 %s61, %s62
      %p64 = scmp.eq.s32.totalorder %s63, 0
      %s66 = sadd.s32 %s65, 1
      %s67 = scalar_select %p64, %s65, %s66
      %p70 = pneg %p64
      %p71 = scmp.eq.s32.totalorder %s13, 1
      %p72 = por %p70, %p71
      %p73 = scmp.ne.s32.totalorder %s65, %s68
      %p74 = scmp.eq.s32.totalorder %s13, 0
      %p75 = por %p73, %p74
      %p76 = scmp.ne.s32.totalorder %s65, %s68
      %p77 = scmp.eq.s32.totalorder %s18, 1
      %p78 = por %p76, %p77
      %p79 = scmp.ne.s32.totalorder %s68, %s69
      %p80 = scmp.eq.s32.totalorder %s18, 0
      %p81 = por %p79, %p80
      %p82 = scmp.ne.s32.totalorder %s68, %s69
      %p83 = scmp.eq.s32.totalorder %s19, 1
      %p84 = por %p82, %p83
      %p86 = scmp.ne.s32.totalorder %s69, %s85
      %p87 = scmp.eq.s32.totalorder %s19, 0
      %p88 = por %p86, %p87
      %s90 = sadd.s32 %s89, 1
      %p93 = scmp.eq.s32.totalorder %s13, 1
      %p94 = scmp.ne.s32.totalorder %s89, %s91
      %p95 = scmp.eq.s32.totalorder %s13, 0
      %p96 = por %p94, %p95
      %p97 = scmp.ne.s32.totalorder %s89, %s91
      %p98 = scmp.eq.s32.totalorder %s18, 1
      %p99 = por %p97, %p98
      %p100 = scmp.ne.s32.totalorder %s91, %s92
      %p101 = scmp.eq.s32.totalorder %s18, 0
      %p102 = por %p100, %p101
      %p103 = scmp.ne.s32.totalorder %s91, %s92
      %p104 = scmp.eq.s32.totalorder %s19, 1
      %p105 = por %p103, %p104
      %p107 = scmp.ne.s32.totalorder %s92, %s106
      %p108 = scmp.eq.s32.totalorder %s19, 0
      %p109 = por %p107, %p108
      %s111 = sadd.s32 %s110, 1
      %p114 = scmp.eq.s32.totalorder %s13, 1
      %p115 = scmp.ne.s32.totalorder %s110, %s112
      %p116 = scmp.eq.s32.totalorder %s13, 0
      %p117 = por %p115, %p116
      %p118 = scmp.ne.s32.totalorder %s110, %s112
      %p119 = scmp.eq.s32.totalorder %s18, 1
      %p120 = por %p118, %p119
      %p121 = scmp.ne.s32.totalorder %s112, %s113
      %p122 = scmp.eq.s32.totalorder %s18, 0
      %p123 = por %p121, %p122
      %p124 = scmp.ne.s32.totalorder %s112, %s113
      %p125 = scmp.eq.s32.totalorder %s19, 1
      %p126 = por %p124, %p125
      %p128 = scmp.ne.s32.totalorder %s113, %s127
      %p129 = scmp.eq.s32.totalorder %s19, 0
      %p130 = por %p128, %p129
      %s131 = ssub.s32 %s20, %s32
      %s132 = ssub.s32 %s21, %s28
      %s133 = sor.u32 %s131, %s132
      %p134 = scmp.eq.s32.totalorder %s133, 0
      %s136 = sadd.s32 %s135, 1
      %s137 = scalar_select %p134, %s135, %s136
      %p140 = pneg %p134
      %p141 = scmp.eq.s32.totalorder %s13, 1
      %p142 = por %p140, %p141
      %p143 = scmp.ne.s32.totalorder %s135, %s138
      %p144 = scmp.eq.s32.totalorder %s13, 0
      %p145 = por %p143, %p144
      %p146 = scmp.ne.s32.totalorder %s135, %s138
      %p147 = scmp.eq.s32.totalorder %s18, 1
      %p148 = por %p146, %p147
      %p149 = scmp.ne.s32.totalorder %s138, %s139
      %p150 = scmp.eq.s32.totalorder %s18, 0
      %p151 = por %p149, %p150
      %p152 = scmp.ne.s32.totalorder %s138, %s139
      %p153 = scmp.eq.s32.totalorder %s19, 1
      %p154 = por %p152, %p153
      %p156 = scmp.ne.s32.totalorder %s139, %s155
      %p157 = scmp.eq.s32.totalorder %s19, 0
      %p158 = por %p156, %p157
      %p159 = scmp.le.s32.totalorder 1, %s13
      %p160 = scmp.lt.s32.totalorder %s13, 3
      %p161 = pnand %p159, %p160
      %p162 = pneg %p161
      // Predicated region
      $region9: #{tpu_custom_call.1} parent=5 // pred_check
        _
      $region10: #{tpu_custom_call.1} parent=5 // pred_check_branch
        %164 = sbr.rel (%p161) target = $region12
      $region11: #{tpu_custom_call.1} parent=5 // pred_region
        %s165 = ssub.s32 %s13, 1
        // Predicated region
        $region13: #{tpu_custom_call.1} parent=11 // pred_check
          %p166 = pneg %p102
        $region14: #{tpu_custom_call.1} parent=11 // pred_check_branch
          %168 = sbr.rel (%p166) target = $region16
        $region15: #{tpu_custom_call.1} parent=11 // pred_region
          _
        $region16: #{tpu_custom_call.1} parent=11 // pred_fallthru
          _
        // Predicated region
        $region17: #{tpu_custom_call.1} parent=11 // pred_check
          %p169 = pneg %p123
        $region18: #{tpu_custom_call.1} parent=11 // pred_check_branch
          %171 = sbr.rel (%p169) target = $region20
        $region19: #{tpu_custom_call.1} parent=11 // pred_region
          _
        $region20: #{tpu_custom_call.1} parent=11 // pred_fallthru
          _
      $region12: #{tpu_custom_call.1} parent=5 // pred_fallthru
        _
      %p172 = scmp.lt.s32.totalorder %s13, 2
      // Predicated region
      $region21: #{tpu_custom_call.1} parent=5 // pred_check
        %p173 = pneg %p172
      $region22: #{tpu_custom_call.1} parent=5 // pred_check_branch
        %175 = sbr.rel (%p173) target = $region24
      $region23: #{tpu_custom_call.1} parent=5 // pred_region
        // Predicated region
        $region25: #{tpu_custom_call.1} parent=23 // pred_check
          %p176 = pneg %p47
        $region26: #{tpu_custom_call.1} parent=23 // pred_check_branch
          %178 = sbr.rel (%p176) target = $region28
        $region27: #{tpu_custom_call.1} parent=23 // pred_region
          %s179 = smul.u32 2, %s21
          %p180 = scmp.lt.s32.totalorder %s20, 1
          %s181 = scalar_select %p180, %s20, 1
          %p182 = scmp.lt.s32.totalorder %s179, 1
          %s183 = scalar_select %p182, %s179, 1
          %s184 = smul.addr %s181, 2
          %s185 = sadd.s32 %s183, %s184
          %s186 = smul.addr %s185, 4
          %s187 = scalar_lea.vmem %s0, %s186
          %s188 = smul.u32 2, %s21
        $region28: #{tpu_custom_call.1} parent=23 // pred_fallthru
          _
        // Predicated region
        $region29: #{tpu_custom_call.1} parent=23 // pred_check
          %p189 = pneg %p75
        $region30: #{tpu_custom_call.1} parent=23 // pred_check_branch
          %191 = sbr.rel (%p189) target = $region32
        $region31: #{tpu_custom_call.1} parent=23 // pred_region
          %s192 = smul.u32 2, %s21
          %p193 = scmp.lt.s32.totalorder %s20, 1
          %s194 = scalar_select %p193, %s20, 1
          %p195 = scmp.lt.s32.totalorder %s192, 1
          %s196 = scalar_select %p195, %s192, 1
          %s197 = smul.addr %s194, 2
          %s198 = sadd.s32 %s196, %s197
          %s199 = smul.addr %s198, 4
          %s200 = scalar_lea.vmem %s1, %s199
          %s201 = smul.u32 2, %s21
        $region32: #{tpu_custom_call.1} parent=23 // pred_fallthru
          _
      $region24: #{tpu_custom_call.1} parent=5 // pred_fallthru
        _
      %p202 = scmp.le.s32.totalorder 1, %s13
      %p203 = scmp.lt.s32.totalorder %s13, 3
      %p204 = pnand %p202, %p203
      %p205 = pneg %p204
      // Predicated region
      $region33: #{tpu_custom_call.1} parent=5 // pred_check
        _
      $region34: #{tpu_custom_call.1} parent=5 // pred_check_branch
        %207 = sbr.rel (%p204) target = $region36
      $region35: #{tpu_custom_call.1} parent=5 // pred_region
        %s208 = ssub.s32 %s13, 1
        %s209 = smul.u32 2, %s23
        %p210 = scmp.lt.s32.totalorder %s22, 1
        %s211 = scalar_select %p210, %s22, 1
        %p212 = scmp.lt.s32.totalorder %s209, 1
        %s213 = scalar_select %p212, %s209, 1
        %s214 = smul.addr %s211, 2
        %s215 = sadd.s32 %s213, %s214
        %s216 = smul.addr %s215, 4
        %s217 = scalar_lea.vmem %s0, %s216
        %p218 = pneg %p53
        %p219 = pneg %p50
        %s220 = smul.u32 2, %s23
        %p221 = scmp.lt.s32.totalorder %s22, 1
        %s222 = scalar_select %p221, %s22, 1
        %p223 = scmp.lt.s32.totalorder %s220, 1
        %s224 = scalar_select %p223, %s220, 1
        %s225 = smul.addr %s222, 2
        %s226 = sadd.s32 %s224, %s225
        %s227 = smul.addr %s226, 4
        %s228 = scalar_lea.vmem %s1, %s227
        %p229 = pneg %p81
        %p230 = pneg %p78
        %p231 = pneg %p102
        %p232 = pneg %p99
        %p233 = pneg %p123
        %p234 = pneg %p120
        %p235 = pneg %p151
        %p236 = pneg %p148
        %s237 = sand.u32 %s138, 1
        %s238 = scalar_lea.sflag [#allocation3], %s237
        %s239 = sand.u32 %s138, 1
        %s240 = smul.addr %s239, 16
        %s241 = scalar_lea.vmem [#allocation2], %s240
        %s242 = smul.u32 2, %s23
        %p243 = scmp.lt.s32.totalorder %s22, 1
        %s244 = scalar_select %p243, %s22, 1
        %p245 = scmp.lt.s32.totalorder %s242, 1
        %s246 = scalar_select %p245, %s242, 1
        %s247 = smul.addr %s244, 2
        %s248 = sadd.s32 %s246, %s247
        %s249 = smul.addr %s248, 4
        %s250 = scalar_lea.vmem %s0, %s249
        %s251 = smul.u32 2, %s23
        %s252 = smul.u32 2, %s23
        %p253 = scmp.lt.s32.totalorder %s22, 1
        %s254 = scalar_select %p253, %s22, 1
        %p255 = scmp.lt.s32.totalorder %s252, 1
        %s256 = scalar_select %p255, %s252, 1
        %s257 = smul.addr %s254, 2
        %s258 = sadd.s32 %s256, %s257
        %s259 = smul.addr %s258, 4
        %s260 = scalar_lea.vmem %s1, %s259
        %s261 = smul.u32 2, %s23
        %s262 = smul.u32 2, %s23
        %v263 = vld [vmem:[%s2] sm:$0xff]
        %s264 = scalar_lea.vmem %s2, 8
        %v265 = vld [vmem:[%s264] sm:$0xff]
        %s266 = scalar_lea.vmem %s2, 16
        %v267 = vld [vmem:[%s266] sm:$0xff]
        %s268 = scalar_lea.vmem %s2, 24
        %v269 = vld [vmem:[%s268] sm:$0xff]
        %s270 = scalar_lea.vmem %s2, 32
        %v271 = vld [vmem:[%s270] sm:$0xff]
        %v272 = vld [vmem:[%s3] sm:$0xff]
        %v273 = vld [vmem:[%s250] sm:$0xff]
        %v274 = vld [vmem:[%s260] sm:$0xff]
        %v275 = vsub.f32 %v273, %v274
        %v276 = vand.u32 2147483647, %v275
        %v277 = vsub.f32 %v276, %v273
        %v278 = vand.u32 2147483647, %v277
        %v279 = vsub.f32 %v276, %v274
        %v280 = vand.u32 2147483647, %v279
        %v282 = vcombine.high %v274, %v274
        %vm283 = vcmask 31744
        %v285 = vsel %vm283, %v265, 0
        %vm287 = vcmask 1043456
        %v288 = vsel %vm287, %v274, 0
        %v290 = vsel %vm287, %v282, 0
        %292 = vmatprep.subr.mxu0 0.0
        %293 = vmatpush1.msra.mxu0 0.0
        %294 = vmatprep.subr.mxu0 0.0
        %295 = vmatpush1.msra.mxu0 0.0
        %296 = vmatprep.subr.mxu0 0.0
        %297 = vmatpush1.msra.mxu0 0.0
        %298 = vmatprep.subr.mxu0 0.0
        %299 = vmatpush1.msra.mxu0 0.0
        %300 = vmatprep.subr.mxu0 0.0
        %301 = vmatpush1.msra.mxu0 0.0
        %302 = vmatprep.subr.mxu0 0.0
        %303 = vmatpush1.msra.mxu0 0.0
        %304 = vmatprep.subr.mxu0 0.0
        %305 = vmatpush1.msra.mxu0 0.0
        %306 = vmatprep.subr.mxu0 0.0
        %307 = vmatpush1.msra.mxu0 0.0
        %308 = vmatprep.subr.mxu0 0.0
        %309 = vmatpush1.msra.mxu0 0.0
        %310 = vmatprep.subr.mxu0 0.0
        %311 = vmatpush1.msra.mxu0 0.0
        %312 = vmatprep.subr.mxu0 0.0
        %313 = vmatpush1.msra.mxu0 0.0
        %314 = vmatprep.subr.mxu0 0.0
        %315 = vmatpush1.msra.mxu0 0.0
        %316 = vmatprep.subr.mxu0 0.0
        %317 = vmatpush1.msra.mxu0 0.0
        %318 = vmatprep.subr.mxu0 0.0
        %319 = vmatpush1.msra.mxu0 0.0
        %320 = vmatprep.subr.mxu0 0.0
        %321 = vmatpush1.msra.mxu0 0.0
        %322 = vmatprep.subr.mxu0 %v290
        %323 = vmatpush1.msra.mxu0 %v288
        %324 = vmatprep.subr.mxu0 0.0
        %325 = vmatpush2.msra.mxu0 0.0
        %326 = vmatprep.subr.mxu0 0.0
        %327 = vmatpush2.msra.mxu0 0.0
        %328 = vmatprep.subr.mxu0 0.0
        %329 = vmatpush2.msra.mxu0 0.0
        %330 = vmatprep.subr.mxu0 0.0
        %331 = vmatpush2.msra.mxu0 0.0
        %332 = vmatprep.subr.mxu0 0.0
        %333 = vmatpush2.msra.mxu0 0.0
        %334 = vmatprep.subr.mxu0 0.0
        %335 = vmatpush2.msra.mxu0 0.0
        %336 = vmatprep.subr.mxu0 0.0
        %337 = vmatpush2.msra.mxu0 0.0
        %338 = vmatprep.subr.mxu0 0.0
        %339 = vmatpush2.msra.mxu0 0.0
        %340 = vmatprep.subr.mxu0 0.0
        %341 = vmatpush2.msra.mxu0 0.0
        %342 = vmatprep.subr.mxu0 0.0
        %343 = vmatpush2.msra.mxu0 0.0
        %344 = vmatprep.subr.mxu0 0.0
        %345 = vmatpush2.msra.mxu0 0.0
        %346 = vmatprep.subr.mxu0 0.0
        %347 = vmatpush2.msra.mxu0 0.0
        %348 = vmatprep.subr.mxu0 0.0
        %349 = vmatpush2.msra.mxu0 0.0
        %350 = vmatprep.subr.mxu0 0.0
        %351 = vmatpush2.msra.mxu0 0.0
        %352 = vmatprep.subr.mxu0 0.0
        %353 = vmatpush2.msra.mxu0 0.0
        %354 = vmatprep.subr.mxu0 0.0
        %355 = vmatpush2.msra.mxu0 0.0
        %356 = vmatprep.mubr.f32.mxu0 0.0
        %357 = vmatmul.mubr.f32.gmra.mxu0 %v285
        %v358 = vpop.f32.mrf.mxu0
        %v359 = vadd.f32 0.0, %v358
        %v360 = vpop.f32.mrf.mxu0
        %v361 = vadd.f32 0.0, %v360
        %362 = vdwg.mxu0
        %v364 = vcombine.high %v273, %v273
        %v366 = vsel %vm283, %v263, 0
        %v368 = vsel %vm287, %v273, 0
        %v370 = vsel %vm287, %v364, 0
        %372 = vmatprep.subr.mxu0 0.0
        %373 = vmatpush1.msra.mxu0 0.0
        %374 = vmatprep.subr.mxu0 0.0
        %375 = vmatpush1.msra.mxu0 0.0
        %376 = vmatprep.subr.mxu0 0.0
        %377 = vmatpush1.msra.mxu0 0.0
        %378 = vmatprep.subr.mxu0 0.0
        %379 = vmatpush1.msra.mxu0 0.0
        %380 = vmatprep.subr.mxu0 0.0
        %381 = vmatpush1.msra.mxu0 0.0
        %382 = vmatprep.subr.mxu0 0.0
        %383 = vmatpush1.msra.mxu0 0.0
        %384 = vmatprep.subr.mxu0 0.0
        %385 = vmatpush1.msra.mxu0 0.0
        %386 = vmatprep.subr.mxu0 0.0
        %387 = vmatpush1.msra.mxu0 0.0
        %388 = vmatprep.subr.mxu0 0.0
        %389 = vmatpush1.msra.mxu0 0.0
        %390 = vmatprep.subr.mxu0 0.0
        %391 = vmatpush1.msra.mxu0 0.0
        %392 = vmatprep.subr.mxu0 0.0
        %393 = vmatpush1.msra.mxu0 0.0
        %394 = vmatprep.subr.mxu0 0.0
        %395 = vmatpush1.msra.mxu0 0.0
        %396 = vmatprep.subr.mxu0 0.0
        %397 = vmatpush1.msra.mxu0 0.0
        %398 = vmatprep.subr.mxu0 0.0
        %399 = vmatpush1.msra.mxu0 0.0
        %400 = vmatprep.subr.mxu0 0.0
        %401 = vmatpush1.msra.mxu0 0.0
        %402 = vmatprep.subr.mxu0 %v370
        %403 = vmatpush1.msra.mxu0 %v368
        %404 = vmatprep.subr.mxu0 0.0
        %405 = vmatpush2.msra.mxu0 0.0
        %406 = vmatprep.subr.mxu0 0.0
        %407 = vmatpush2.msra.mxu0 0.0
        %408 = vmatprep.subr.mxu0 0.0
        %409 = vmatpush2.msra.mxu0 0.0
        %410 = vmatprep.subr.mxu0 0.0
        %411 = vmatpush2.msra.mxu0 0.0
        %412 = vmatprep.subr.mxu0 0.0
        %413 = vmatpush2.msra.mxu0 0.0
        %414 = vmatprep.subr.mxu0 0.0
        %415 = vmatpush2.msra.mxu0 0.0
        %416 = vmatprep.subr.mxu0 0.0
        %417 = vmatpush2.msra.mxu0 0.0
        %418 = vmatprep.subr.mxu0 0.0
        %419 = vmatpush2.msra.mxu0 0.0
        %420 = vmatprep.subr.mxu0 0.0
        %421 = vmatpush2.msra.mxu0 0.0
        %422 = vmatprep.subr.mxu0 0.0
        %423 = vmatpush2.msra.mxu0 0.0
        %424 = vmatprep.subr.mxu0 0.0
        %425 = vmatpush2.msra.mxu0 0.0
        %426 = vmatprep.subr.mxu0 0.0
        %427 = vmatpush2.msra.mxu0 0.0
        %428 = vmatprep.subr.mxu0 0.0
        %429 = vmatpush2.msra.mxu0 0.0
        %430 = vmatprep.subr.mxu0 0.0
        %431 = vmatpush2.msra.mxu0 0.0
        %432 = vmatprep.subr.mxu0 0.0
        %433 = vmatpush2.msra.mxu0 0.0
        %434 = vmatprep.subr.mxu0 0.0
        %435 = vmatpush2.msra.mxu0 0.0
        %436 = vmatprep.mubr.f32.mxu0 0.0
        %437 = vmatmul.mubr.f32.gmra.mxu0 %v366
        %v438 = vpop.f32.mrf.mxu0
        %v439 = vadd.f32 %v359, %v438
        %v440 = vpop.f32.mrf.mxu0
        %v441 = vadd.f32 %v361, %v440
        %442 = vdwg.mxu0
        %v444 = vcombine.high %v276, %v276
        %v446 = vsel %vm283, %v267, 0
        %v448 = vsel %vm287, %v276, 0
        %v450 = vsel %vm287, %v444, 0
        %452 = vmatprep.subr.mxu0 0.0
        %453 = vmatpush1.msra.mxu0 0.0
        %454 = vmatprep.subr.mxu0 0.0
        %455 = vmatpush1.msra.mxu0 0.0
        %456 = vmatprep.subr.mxu0 0.0
        %457 = vmatpush1.msra.mxu0 0.0
        %458 = vmatprep.subr.mxu0 0.0
        %459 = vmatpush1.msra.mxu0 0.0
        %460 = vmatprep.subr.mxu0 0.0
        %461 = vmatpush1.msra.mxu0 0.0
        %462 = vmatprep.subr.mxu0 0.0
        %463 = vmatpush1.msra.mxu0 0.0
        %464 = vmatprep.subr.mxu0 0.0
        %465 = vmatpush1.msra.mxu0 0.0
        %466 = vmatprep.subr.mxu0 0.0
        %467 = vmatpush1.msra.mxu0 0.0
        %468 = vmatprep.subr.mxu0 0.0
        %469 = vmatpush1.msra.mxu0 0.0
        %470 = vmatprep.subr.mxu0 0.0
        %471 = vmatpush1.msra.mxu0 0.0
        %472 = vmatprep.subr.mxu0 0.0
        %473 = vmatpush1.msra.mxu0 0.0
        %474 = vmatprep.subr.mxu0 0.0
        %475 = vmatpush1.msra.mxu0 0.0
        %476 = vmatprep.subr.mxu0 0.0
        %477 = vmatpush1.msra.mxu0 0.0
        %478 = vmatprep.subr.mxu0 0.0
        %479 = vmatpush1.msra.mxu0 0.0
        %480 = vmatprep.subr.mxu0 0.0
        %481 = vmatpush1.msra.mxu0 0.0
        %482 = vmatprep.subr.mxu0 %v450
        %483 = vmatpush1.msra.mxu0 %v448
        %484 = vmatprep.subr.mxu0 0.0
        %485 = vmatpush2.msra.mxu0 0.0
        %486 = vmatprep.subr.mxu0 0.0
        %487 = vmatpush2.msra.mxu0 0.0
        %488 = vmatprep.subr.mxu0 0.0
        %489 = vmatpush2.msra.mxu0 0.0
        %490 = vmatprep.subr.mxu0 0.0
        %491 = vmatpush2.msra.mxu0 0.0
        %492 = vmatprep.subr.mxu0 0.0
        %493 = vmatpush2.msra.mxu0 0.0
        %494 = vmatprep.subr.mxu0 0.0
        %495 = vmatpush2.msra.mxu0 0.0
        %496 = vmatprep.subr.mxu0 0.0
        %497 = vmatpush2.msra.mxu0 0.0
        %498 = vmatprep.subr.mxu0 0.0
        %499 = vmatpush2.msra.mxu0 0.0
        %500 = vmatprep.subr.mxu0 0.0
        %501 = vmatpush2.msra.mxu0 0.0
        %502 = vmatprep.subr.mxu0 0.0
        %503 = vmatpush2.msra.mxu0 0.0
        %504 = vmatprep.subr.mxu0 0.0
        %505 = vmatpush2.msra.mxu0 0.0
        %506 = vmatprep.subr.mxu0 0.0
        %507 = vmatpush2.msra.mxu0 0.0
        %508 = vmatprep.subr.mxu0 0.0
        %509 = vmatpush2.msra.mxu0 0.0
        %510 = vmatprep.subr.mxu0 0.0
        %511 = vmatpush2.msra.mxu0 0.0
        %512 = vmatprep.subr.mxu0 0.0
        %513 = vmatpush2.msra.mxu0 0.0
        %514 = vmatprep.subr.mxu0 0.0
        %515 = vmatpush2.msra.mxu0 0.0
        %516 = vmatprep.mubr.f32.mxu0 0.0
        %517 = vmatmul.mubr.f32.gmra.mxu0 %v446
        %v518 = vpop.f32.mrf.mxu0
        %v519 = vadd.f32 0.0, %v518
        %v520 = vpop.f32.mrf.mxu0
        %v521 = vadd.f32 0.0, %v520
        %522 = vdwg.mxu0
        %v523 = vadd.f32 %v439, %v519
        %v524 = vadd.f32 %v441, %v521
        %v526 = vcombine.high %v278, %v278
        %v528 = vsel %vm283, %v269, 0
        %v530 = vsel %vm287, %v278, 0
        %v532 = vsel %vm287, %v526, 0
        %534 = vmatprep.subr.mxu0 0.0
        %535 = vmatpush1.msra.mxu0 0.0
        %536 = vmatprep.subr.mxu0 0.0
        %537 = vmatpush1.msra.mxu0 0.0
        %538 = vmatprep.subr.mxu0 0.0
        %539 = vmatpush1.msra.mxu0 0.0
        %540 = vmatprep.subr.mxu0 0.0
        %541 = vmatpush1.msra.mxu0 0.0
        %542 = vmatprep.subr.mxu0 0.0
        %543 = vmatpush1.msra.mxu0 0.0
        %544 = vmatprep.subr.mxu0 0.0
        %545 = vmatpush1.msra.mxu0 0.0
        %546 = vmatprep.subr.mxu0 0.0
        %547 = vmatpush1.msra.mxu0 0.0
        %548 = vmatprep.subr.mxu0 0.0
        %549 = vmatpush1.msra.mxu0 0.0
        %550 = vmatprep.subr.mxu0 0.0
        %551 = vmatpush1.msra.mxu0 0.0
        %552 = vmatprep.subr.mxu0 0.0
        %553 = vmatpush1.msra.mxu0 0.0
        %554 = vmatprep.subr.mxu0 0.0
        %555 = vmatpush1.msra.mxu0 0.0
        %556 = vmatprep.subr.mxu0 0.0
        %557 = vmatpush1.msra.mxu0 0.0
        %558 = vmatprep.subr.mxu0 0.0
        %559 = vmatpush1.msra.mxu0 0.0
        %560 = vmatprep.subr.mxu0 0.0
        %561 = vmatpush1.msra.mxu0 0.0
        %562 = vmatprep.subr.mxu0 0.0
        %563 = vmatpush1.msra.mxu0 0.0
        %564 = vmatprep.subr.mxu0 %v532
        %565 = vmatpush1.msra.mxu0 %v530
        %566 = vmatprep.subr.mxu0 0.0
        %567 = vmatpush2.msra.mxu0 0.0
        %568 = vmatprep.subr.mxu0 0.0
        %569 = vmatpush2.msra.mxu0 0.0
        %570 = vmatprep.subr.mxu0 0.0
        %571 = vmatpush2.msra.mxu0 0.0
        %572 = vmatprep.subr.mxu0 0.0
        %573 = vmatpush2.msra.mxu0 0.0
        %574 = vmatprep.subr.mxu0 0.0
        %575 = vmatpush2.msra.mxu0 0.0
        %576 = vmatprep.subr.mxu0 0.0
        %577 = vmatpush2.msra.mxu0 0.0
        %578 = vmatprep.subr.mxu0 0.0
        %579 = vmatpush2.msra.mxu0 0.0
        %580 = vmatprep.subr.mxu0 0.0
        %581 = vmatpush2.msra.mxu0 0.0
        %582 = vmatprep.subr.mxu0 0.0
        %583 = vmatpush2.msra.mxu0 0.0
        %584 = vmatprep.subr.mxu0 0.0
        %585 = vmatpush2.msra.mxu0 0.0
        %586 = vmatprep.subr.mxu0 0.0
        %587 = vmatpush2.msra.mxu0 0.0
        %588 = vmatprep.subr.mxu0 0.0
        %589 = vmatpush2.msra.mxu0 0.0
        %590 = vmatprep.subr.mxu0 0.0
        %591 = vmatpush2.msra.mxu0 0.0
        %592 = vmatprep.subr.mxu0 0.0
        %593 = vmatpush2.msra.mxu0 0.0
        %594 = vmatprep.subr.mxu0 0.0
        %595 = vmatpush2.msra.mxu0 0.0
        %596 = vmatprep.subr.mxu0 0.0
        %597 = vmatpush2.msra.mxu0 0.0
        %598 = vmatprep.mubr.f32.mxu0 0.0
        %599 = vmatmul.mubr.f32.gmra.mxu0 %v528
        %v600 = vpop.f32.mrf.mxu0
        %v601 = vadd.f32 0.0, %v600
        %v602 = vpop.f32.mrf.mxu0
        %v603 = vadd.f32 0.0, %v602
        %604 = vdwg.mxu0
        %v605 = vadd.f32 %v523, %v601
        %v606 = vadd.f32 %v524, %v603
        %v608 = vcombine.high %v280, %v280
        %v610 = vsel %vm283, %v271, 0
        %v612 = vsel %vm287, %v280, 0
        %v614 = vsel %vm287, %v608, 0
        %616 = vmatprep.subr.mxu0 0.0
        %617 = vmatpush1.msra.mxu0 0.0
        %618 = vmatprep.subr.mxu0 0.0
        %619 = vmatpush1.msra.mxu0 0.0
        %620 = vmatprep.subr.mxu0 0.0
        %621 = vmatpush1.msra.mxu0 0.0
        %622 = vmatprep.subr.mxu0 0.0
        %623 = vmatpush1.msra.mxu0 0.0
        %624 = vmatprep.subr.mxu0 0.0
        %625 = vmatpush1.msra.mxu0 0.0
        %626 = vmatprep.subr.mxu0 0.0
        %627 = vmatpush1.msra.mxu0 0.0
        %628 = vmatprep.subr.mxu0 0.0
        %629 = vmatpush1.msra.mxu0 0.0
        %630 = vmatprep.subr.mxu0 0.0
        %631 = vmatpush1.msra.mxu0 0.0
        %632 = vmatprep.subr.mxu0 0.0
        %633 = vmatpush1.msra.mxu0 0.0
        %634 = vmatprep.subr.mxu0 0.0
        %635 = vmatpush1.msra.mxu0 0.0
        %636 = vmatprep.subr.mxu0 0.0
        %637 = vmatpush1.msra.mxu0 0.0
        %638 = vmatprep.subr.mxu0 0.0
        %639 = vmatpush1.msra.mxu0 0.0
        %640 = vmatprep.subr.mxu0 0.0
        %641 = vmatpush1.msra.mxu0 0.0
        %642 = vmatprep.subr.mxu0 0.0
        %643 = vmatpush1.msra.mxu0 0.0
        %644 = vmatprep.subr.mxu0 0.0
        %645 = vmatpush1.msra.mxu0 0.0
        %646 = vmatprep.subr.mxu0 %v614
        %647 = vmatpush1.msra.mxu0 %v612
        %648 = vmatprep.subr.mxu0 0.0
        %649 = vmatpush2.msra.mxu0 0.0
        %650 = vmatprep.subr.mxu0 0.0
        %651 = vmatpush2.msra.mxu0 0.0
        %652 = vmatprep.subr.mxu0 0.0
        %653 = vmatpush2.msra.mxu0 0.0
        %654 = vmatprep.subr.mxu0 0.0
        %655 = vmatpush2.msra.mxu0 0.0
        %656 = vmatprep.subr.mxu0 0.0
        %657 = vmatpush2.msra.mxu0 0.0
        %658 = vmatprep.subr.mxu0 0.0
        %659 = vmatpush2.msra.mxu0 0.0
        %660 = vmatprep.subr.mxu0 0.0
        %661 = vmatpush2.msra.mxu0 0.0
        %662 = vmatprep.subr.mxu0 0.0
        %663 = vmatpush2.msra.mxu0 0.0
        %664 = vmatprep.subr.mxu0 0.0
        %665 = vmatpush2.msra.mxu0 0.0
        %666 = vmatprep.subr.mxu0 0.0
        %667 = vmatpush2.msra.mxu0 0.0
        %668 = vmatprep.subr.mxu0 0.0
        %669 = vmatpush2.msra.mxu0 0.0
        %670 = vmatprep.subr.mxu0 0.0
        %671 = vmatpush2.msra.mxu0 0.0
        %672 = vmatprep.subr.mxu0 0.0
        %673 = vmatpush2.msra.mxu0 0.0
        %674 = vmatprep.subr.mxu0 0.0
        %675 = vmatpush2.msra.mxu0 0.0
        %676 = vmatprep.subr.mxu0 0.0
        %677 = vmatpush2.msra.mxu0 0.0
        %678 = vmatprep.subr.mxu0 0.0
        %679 = vmatpush2.msra.mxu0 0.0
        %680 = vmatprep.mubr.f32.mxu0 0.0
        %681 = vmatmul.mubr.f32.gmra.mxu0 %v610
        %v682 = vpop.f32.mrf.mxu0
        %v683 = vadd.f32 0.0, %v682
        %v684 = vpop.f32.mrf.mxu0
        %v685 = vadd.f32 0.0, %v684
        %686 = vdwg.mxu0
        %v687 = vadd.f32 %v605, %v683
        %v688 = vadd.f32 %v606, %v685
        %690 = vset.pattern.permute.xlu0 0
        %691 = vperm.xlu0 %690, %v272
        %v692 = vpop.permute.xlu0 %691
        %v694 = vadd.f32 %v687, %v692
        %v695 = vadd.f32 %v688, %v692
        %696 = vst [vmem:[%s241] sm:$0xff] %v694
        %697 = vst [vmem:[%s241 + $0x8] sm:$0xff] %v695
        %s698 = sand.u32 %s138, 1
        %s699 = scalar_lea.sflag [#allocation3], %s698
        %s700 = sand.u32 %s138, 1
        %s701 = smul.addr %s700, 16
        %s702 = scalar_lea.vmem [#allocation2], %s701
        // Predicated region
        $region37: #{tpu_custom_call.1} parent=35 // pred_check
          %p703 = pneg %p148
        $region38: #{tpu_custom_call.1} parent=35 // pred_check_branch
          %705 = sbr.rel (%p703) target = $region40
        $region39: #{tpu_custom_call.1} parent=35 // pred_region
          %s706 = smul.u32 2, %s23
          %s708 = ssub.s32 256, 256
          %709 = vsyncadd %s699, %s708
          %s710 = smul.addr %s22, 2
          %s711 = sadd.s32 %s706, %s710
          %s712 = smul.addr %s711, 128
          %s713 = scalar_lea.hbm %s4, %s712
          %s715 = sshll.u32 %s702, 4
          %s716 = int_to_ptr.vmem [resolvable:$true] %s715
          %718 = dma.vmem_to_hbm [thread:$0]  %s716, 256, %s713, %s699
        $region40: #{tpu_custom_call.1} parent=35 // pred_fallthru
          _
      $region36: #{tpu_custom_call.1} parent=5 // pred_fallthru
        _
      %p719 = scmp.le.s32.totalorder 2, %s13
      // Predicated region
      $region41: #{tpu_custom_call.1} parent=5 // pred_check
        %p720 = pneg %p719
      $region42: #{tpu_custom_call.1} parent=5 // pred_check_branch
        %722 = sbr.rel (%p720) target = $region44
      $region43: #{tpu_custom_call.1} parent=5 // pred_region
        %s723 = ssub.s32 %s13, 2
        // Predicated region
        $region45: #{tpu_custom_call.1} parent=43 // pred_check
          %p724 = pneg %p154
        $region46: #{tpu_custom_call.1} parent=43 // pred_check_branch
          %726 = sbr.rel (%p724) target = $region48
        $region47: #{tpu_custom_call.1} parent=43 // pred_region
          %s727 = sand.u32 %s139, 1
          %s728 = scalar_lea.sflag [#allocation3], %s727
          %s729 = sand.u32 %s139, 1
          %s730 = smul.addr %s729, 16
          %s731 = scalar_lea.vmem [#allocation2], %s730
          %732 = dma.done %s728, 256
        $region48: #{tpu_custom_call.1} parent=43 // pred_fallthru
          _
      $region44: #{tpu_custom_call.1} parent=5 // pred_fallthru
        _
    $region6: #{tpu_custom_call.1} parent=1 // loop_footer
      %s17 = sadd.s32 1, %s13
    $region7: #{tpu_custom_call.1} parent=1 // loop_footer_branch
      %12 = sbr.rel target = $region3
    $region8: #{tpu_custom_call.1} parent=1 // loop_exit
      _
    %733 = vsyncpa [#allocation3], 1
    %s734 = scalar_lea.sflag [#allocation3], 1
    %735 = vsyncpa %s734, 1

</llo_original>
